<compile_context>
chip_gen: v7x
topology: tpu7x:2x2x1
jax: 0.10.0
libtpu: 0.0.40
codegen_flags: <defaults>
</compile_context>

<pallas_src>
import jax
import jax.numpy as jnp
from jax.experimental import pallas as pl
from jax.experimental.pallas import tpu as pltpu


def _round_up(a: int, b: int) -> int:
    return (a + b - 1) // b * b


def _pick_tile(n: int, requested: int) -> int:
    """Node tile: multiple of 128, <= requested, and small enough that the grid
    has >= 2 programs when N allows it (so v7x's second TensorCore gets work)."""
    t = min(_round_up(requested, 128), _round_up(n, 128))
    if _round_up(n, 128) >= 256:
        t = min(t, _round_up((n + 1) // 2, 128))
    return max(t, 128)


def _stop_node_kernel(x_ref, w1_ref, b1_ref, w2_ref, b2_ref, w3_ref, b3_ref, out_ref):
    x = x_ref[...]        # (tile_n, D)   -- nodes on sublanes, features on lanes
    w1 = w1_ref[...]      # (D1, D)       -- PyTorch [out, in] layout
    w2 = w2_ref[...]      # (H,  D1)
    w3 = w3_ref[...]      # (O,  H)
    cdt = w1.dtype        # MXU operand dtype (f32 or bf16)

    # Layer 1: h = relu(W1 @ x^T + b1)  -> (D1, tile_n), lane-dense on nodes.
    # Contract x's minor (feature) dim directly; no transpose materialized.
    h = jax.lax.dot_general(
        w1, x,
        dimension_numbers=(((1,), (1,)), ((), ())),
        preferred_element_type=jnp.float32)
    h = jnp.maximum(h + b1_ref[...], 0.0)            # bias (D1,1) lane-broadcast, f32

    # Layer 2: h = relu(W2 @ h + b2)  -> (H, tile_n)
    h = jnp.dot(w2, h.astype(cdt), preferred_element_type=jnp.float32)
    h = jnp.maximum(h + b2_ref[...], 0.0)

    # Layer 3: s = W3 @ h + b3  -> (O, tile_n)  (lane-dense, unmasked 128-wide store)
    s = jnp.dot(w3, h.astype(cdt), preferred_element_type=jnp.float32)
    out_ref[...] = (s + b3_ref[...]).astype(out_ref.dtype)


def stop_node_predictor(x, w1, b1, w2, b2, w3, b3, *,
                        tile_n=1024, compute_dtype=jnp.float32, to_squeeze=None):
    """x: [N, dim_latent]; w* in PyTorch nn.Linear layout [out, in]; b*: [out]."""
    assert x.ndim == 2
    N, D = x.shape
    D1, Din = w1.shape          # first-layer out dim derived from the weight itself
    H = w2.shape[0]
    O = w3.shape[0]
    assert Din == D and w2.shape[1] == D1 and w3.shape[1] == H
    if to_squeeze is None:
        to_squeeze = (O == 1)

    t = _pick_tile(N, tile_n)
    Np = _round_up(N, t)

    cdt = jnp.dtype(compute_dtype)
    x_p = x if Np == N else jnp.pad(x, ((0, Np - N), (0, 0)))
    x_c = x_p.astype(cdt)
    w1c, w2c, w3c = w1.astype(cdt), w2.astype(cdt), w3.astype(cdt)
    b1c = b1.reshape(D1, 1).astype(jnp.float32)
    b2c = b2.reshape(H, 1).astype(jnp.float32)
    b3c = b3.reshape(O, 1).astype(jnp.float32)

    grid = (Np // t,)
    out = pl.pallas_call(
        _stop_node_kernel,
        out_shape=jax.ShapeDtypeStruct((O, Np), jnp.float32),
        grid_spec=pltpu.PrefetchScalarGridSpec(
            num_scalar_prefetch=0,
            grid=grid,
            in_specs=[
                pl.BlockSpec((t, D), lambda i: (i, 0)),     # x tile (streamed)
                pl.BlockSpec((D1, D), lambda i: (0, 0)),    # W1  (VMEM-resident)
                pl.BlockSpec((D1, 1), lambda i: (0, 0)),    # b1
                pl.BlockSpec((H, D1), lambda i: (0, 0)),    # W2
                pl.BlockSpec((H, 1), lambda i: (0, 0)),     # b2
                pl.BlockSpec((O, H), lambda i: (0, 0)),     # W3
                pl.BlockSpec((O, 1), lambda i: (0, 0)),     # b3
            ],
            out_specs=pl.BlockSpec((O, t), lambda i: (0, i)),   # lane-dense scores
        ),
        compiler_params=pltpu.CompilerParams(
            dimension_semantics=("parallel",),
        ),
    )(x_c, w1c, b1c, w2c, b2c, w3c, b3c)

    out = out[:, :N]                 # drop padded nodes
    if to_squeeze:
        return jnp.squeeze(out)      # (1, N) -> (N,)  (scalar if N == 1, like torch)
    return out.T                     # (N, O), matching the PyTorch forward


def _init_linear(key, out_dim, in_dim):
    # deterministic synthetic init (roughly PyTorch's uniform(-1/sqrt(in), 1/sqrt(in)))
    kw, kb = jax.random.split(key)
    bound = 1.0 / jnp.sqrt(jnp.float32(in_dim))
    w = jax.random.uniform(kw, (out_dim, in_dim), jnp.float32, -bound, bound)
    b = jax.random.uniform(kb, (out_dim,), jnp.float32, -bound, bound)
    return w, b


if __name__ == "__main__":
    dim_latent = 32
    hidden_edge_scores = 64
    output_dim = 1
    num_nodes = 300   # not a tile multiple: exercises padding + a 2-program grid

    key = jax.random.PRNGKey(0)
    kx, k1, k2, k3 = jax.random.split(key, 4)

    x = jax.random.normal(kx, (num_nodes, dim_latent), jnp.float32)
    w1, b1 = _init_linear(k1, dim_latent, dim_latent)
    w2, b2 = _init_linear(k2, hidden_edge_scores, dim_latent)
    w3, b3 = _init_linear(k3, output_dim, hidden_edge_scores)

    # f32 path
    score = jax.block_until_ready(stop_node_predictor(x, w1, b1, w2, b2, w3, b3))

    # pure-JAX reference
    h = jnp.maximum(x @ w1.T + b1, 0.0)
    h = jnp.maximum(h @ w2.T + b2, 0.0)
    ref = jnp.squeeze(h @ w3.T + b3)

    assert score.shape == ref.shape == (num_nodes,), (score.shape, ref.shape)
    assert jnp.allclose(score, ref, atol=1e-4, rtol=1e-4), float(
        jnp.max(jnp.abs(score - ref)))

    # bf16 MXU-operand path (f32 accumulate / bias / ReLU) — loose tolerance
    score_bf16 = jax.block_until_ready(
        stop_node_predictor(x, w1, b1, w2, b2, w3, b3, compute_dtype=jnp.bfloat16))
    assert score_bf16.shape == (num_nodes,)
    assert jnp.allclose(score_bf16, ref, atol=1e-1, rtol=1e-1), float(
        jnp.max(jnp.abs(score_bf16 - ref)))

    print("KERNEL_OK")
</pallas_src>

<mosaic_0001>
module attributes {stable_mosaic.version = 11 : i64} {
  func.func @_stop_node_kernel(%arg0: i32, %arg1: memref<256x32xf32, #tpu.memory_space<vmem>>, %arg2: memref<32x32xf32, #tpu.memory_space<vmem>>, %arg3: memref<32x1xf32, #tpu.memory_space<vmem>>, %arg4: memref<64x32xf32, #tpu.memory_space<vmem>>, %arg5: memref<64x1xf32, #tpu.memory_space<vmem>>, %arg6: memref<1x64xf32, #tpu.memory_space<vmem>>, %arg7: memref<1x1xf32, #tpu.memory_space<vmem>>, %arg8: memref<1x256xf32, #tpu.memory_space<vmem>>) attributes {dimension_semantics = [#tpu.dimension_semantics<parallel>], iteration_bounds = array<i64: 2>, scalar_prefetch = 0 : i64, scratch_operands = 0 : i64, tpu.core_type = #tpu.core_type<tc>, window_params = [{transform_indices = @transform_0, window_bounds = array<i64: 256, 32>}, {pipeline_mode = #tpu.pipeline_mode<synchronous>, transform_indices = @transform_1, window_bounds = array<i64: 32, 32>}, {pipeline_mode = #tpu.pipeline_mode<synchronous>, transform_indices = @transform_2, window_bounds = array<i64: 32, 1>}, {pipeline_mode = #tpu.pipeline_mode<synchronous>, transform_indices = @transform_3, window_bounds = array<i64: 64, 32>}, {pipeline_mode = #tpu.pipeline_mode<synchronous>, transform_indices = @transform_4, window_bounds = array<i64: 64, 1>}, {pipeline_mode = #tpu.pipeline_mode<synchronous>, transform_indices = @transform_5, window_bounds = array<i64: 1, 64>}, {pipeline_mode = #tpu.pipeline_mode<synchronous>, transform_indices = @transform_6, window_bounds = array<i64: 1, 1>}, {transform_indices = @transform_7, window_bounds = array<i64: 1, 256>}]} {
    %c0 = arith.constant 0 : index
    %c0_0 = arith.constant 0 : index
    %0 = vector.load %arg1[%c0, %c0_0] : memref<256x32xf32, #tpu.memory_space<vmem>>, vector<256x32xf32>
    %c0_1 = arith.constant 0 : index
    %c0_2 = arith.constant 0 : index
    %1 = vector.load %arg2[%c0_1, %c0_2] : memref<32x32xf32, #tpu.memory_space<vmem>>, vector<32x32xf32>
    %c0_3 = arith.constant 0 : index
    %c0_4 = arith.constant 0 : index
    %2 = vector.load %arg4[%c0_3, %c0_4] : memref<64x32xf32, #tpu.memory_space<vmem>>, vector<64x32xf32>
    %c0_5 = arith.constant 0 : index
    %c0_6 = arith.constant 0 : index
    %3 = vector.load %arg6[%c0_5, %c0_6] : memref<1x64xf32, #tpu.memory_space<vmem>>, vector<1x64xf32>
    %cst = arith.constant dense<0.000000e+00> : vector<32x256xf32>
    %4 = tpu.matmul %1, %0, %cst {dimension_numbers = #tpu.dot_dimension_numbers<[1], [1], [0], [0], [0, 0, 1, 0], [], []>} : vector<32x32xf32>, vector<256x32xf32>, vector<32x256xf32> -> vector<32x256xf32>
    %c0_7 = arith.constant 0 : index
    %c0_8 = arith.constant 0 : index
    %5 = vector.load %arg3[%c0_7, %c0_8] : memref<32x1xf32, #tpu.memory_space<vmem>>, vector<32x1xf32>
    %6 = vector.broadcast %5 : vector<32x1xf32> to vector<32x256xf32>
    %7 = arith.addf %4, %6 : vector<32x256xf32>
    %cst_9 = arith.constant 0.000000e+00 : f32
    %8 = vector.broadcast %cst_9 : f32 to vector<32x256xf32>
    %9 = arith.maximumf %7, %8 : vector<32x256xf32>
    %cst_10 = arith.constant dense<0.000000e+00> : vector<64x256xf32>
    %10 = tpu.matmul %2, %9, %cst_10 {dimension_numbers = #tpu.dot_dimension_numbers<[1], [0], [0], [1], [0, 0, 1, 1], [], []>} : vector<64x32xf32>, vector<32x256xf32>, vector<64x256xf32> -> vector<64x256xf32>
    %c0_11 = arith.constant 0 : index
    %c0_12 = arith.constant 0 : index
    %11 = vector.load %arg5[%c0_11, %c0_12] : memref<64x1xf32, #tpu.memory_space<vmem>>, vector<64x1xf32>
    %12 = vector.broadcast %11 : vector<64x1xf32> to vector<64x256xf32>
    %13 = arith.addf %10, %12 : vector<64x256xf32>
    %cst_13 = arith.constant 0.000000e+00 : f32
    %14 = vector.broadcast %cst_13 : f32 to vector<64x256xf32>
    %15 = arith.maximumf %13, %14 : vector<64x256xf32>
    %cst_14 = arith.constant dense<0.000000e+00> : vector<1x256xf32>
    %16 = tpu.matmul %3, %15, %cst_14 {dimension_numbers = #tpu.dot_dimension_numbers<[1], [0], [0], [1], [0, 0, 1, 1], [], []>} : vector<1x64xf32>, vector<64x256xf32>, vector<1x256xf32> -> vector<1x256xf32>
    %c0_15 = arith.constant 0 : index
    %c0_16 = arith.constant 0 : index
    %17 = vector.load %arg7[%c0_15, %c0_16] : memref<1x1xf32, #tpu.memory_space<vmem>>, vector<1x1xf32>
    %18 = vector.broadcast %17 : vector<1x1xf32> to vector<1x256xf32>
    %19 = arith.addf %16, %18 : vector<1x256xf32>
    %c0_17 = arith.constant 0 : index
    %c0_18 = arith.constant 0 : index
    %20 = vector.load %arg8[%c0_17, %c0_18] : memref<1x256xf32, #tpu.memory_space<vmem>>, vector<1x256xf32>
    tpu.vector_store %arg8[%c0_17, %c0_18], %19 {strides = array<i32>} : memref<1x256xf32, #tpu.memory_space<vmem>>, vector<1x256xf32>,
    return
  }
  func.func @transform_0(%arg0: i32) -> (i32, i32) {
    %c0_i32 = arith.constant 0 : i32
    %c0_i32_0 = arith.constant 0 : i32
    return %arg0, %c0_i32 : i32, i32
  }
  func.func @transform_1(%arg0: i32) -> (i32, i32) {
    %c0_i32 = arith.constant 0 : i32
    %c0_i32_0 = arith.constant 0 : i32
    %c0_i32_1 = arith.constant 0 : i32
    return %c0_i32, %c0_i32_0 : i32, i32
  }
  func.func @transform_2(%arg0: i32) -> (i32, i32) {
    %c0_i32 = arith.constant 0 : i32
    %c0_i32_0 = arith.constant 0 : i32
    %c0_i32_1 = arith.constant 0 : i32
    return %c0_i32, %c0_i32_0 : i32, i32
  }
  func.func @transform_3(%arg0: i32) -> (i32, i32) {
    %c0_i32 = arith.constant 0 : i32
    %c0_i32_0 = arith.constant 0 : i32
    %c0_i32_1 = arith.constant 0 : i32
    return %c0_i32, %c0_i32_0 : i32, i32
  }
  func.func @transform_4(%arg0: i32) -> (i32, i32) {
    %c0_i32 = arith.constant 0 : i32
    %c0_i32_0 = arith.constant 0 : i32
    %c0_i32_1 = arith.constant 0 : i32
    return %c0_i32, %c0_i32_0 : i32, i32
  }
  func.func @transform_5(%arg0: i32) -> (i32, i32) {
    %c0_i32 = arith.constant 0 : i32
    %c0_i32_0 = arith.constant 0 : i32
    %c0_i32_1 = arith.constant 0 : i32
    return %c0_i32, %c0_i32_0 : i32, i32
  }
  func.func @transform_6(%arg0: i32) -> (i32, i32) {
    %c0_i32 = arith.constant 0 : i32
    %c0_i32_0 = arith.constant 0 : i32
    %c0_i32_1 = arith.constant 0 : i32
    return %c0_i32, %c0_i32_0 : i32, i32
  }
  func.func @transform_7(%arg0: i32) -> (i32, i32) {
    %c0_i32 = arith.constant 0 : i32
    %c0_i32_0 = arith.constant 0 : i32
    return %c0_i32, %arg0 : i32, i32
  }
}

</mosaic_0001>

<llo_original>
// kernel: tpu_custom_call.1
$region0: #{tpu_custom_call.1}
  #allocation0 [shape = 'u32[]', space=smem, size = 0x4, offset = 0x4, fixed_abs, tag = 'smem constant byte address 0x4 - core index']
  #allocation1 [shape = 'u32[144,128]{1,0:T(1,128)}', space=vmem, size = 0x12000, scoped, tag = 'internal scratch']
  #allocation2 [shape = 'f32[1,1]{1,0:T(1,128)S(1)}', space=vmem, size = 0x200, scoped, tag = 'scoped memory for tpu_custom_call.1']
  %s0 = inlined_call_operand.vmem [shape: f32[512,32], index: 0, kind: input, shape index: {}]
  %s1 = inlined_call_operand.vmem [shape: f32[32,32], index: 1, kind: input, shape index: {}]
  %s2 = inlined_call_operand.vmem [shape: f32[32,1], index: 2, kind: input, shape index: {}]
  %s3 = inlined_call_operand.vmem [shape: f32[64,32], index: 3, kind: input, shape index: {}]
  %s4 = inlined_call_operand.vmem [shape: f32[64,1], index: 4, kind: input, shape index: {}]
  %s5 = inlined_call_operand.vmem [shape: f32[1,64], index: 5, kind: input, shape index: {}]
  %s6 = inlined_call_operand.<no memory space> [shape: f32[1,1], index: 6, kind: input, shape index: {}]
  %s7 = inlined_call_operand.hbm [shape: f32[1,512], index: 7, kind: output, shape index: {}]
  %s8 = sld [smem:[#allocation0]]
  $region61: #{tpu_custom_call.1} parent=0
    _
  %s10 = ssub.s32 1, %s8
  %s11 = scalar_select 0, %s10, %s8
  %v12 = vstv %s6
  %13 = vst [vmem:[#allocation2] sm:$0x1] %v12
  $region1: #{tpu_custom_call.1} parent=0
    #allocation3 [shape = 'u8[2048]{0}', space=vmem, size = 0x800, scoped, tag = 'output window, operand 0']
    #allocation4 [shape = 's32[2]{0}', space=sflag, size = 0x8, scoped, tag = 'scoped memory for tpu_custom_call.1']
    %14 = vsyncpa [#allocation4], 0
    %s15 = scalar_lea.sflag [#allocation4], 1
    %16 = vsyncpa %s15, 0
    loop: start=0, step=1, limit=4
    $region2: #{tpu_custom_call.1} parent=1 // loop_pre_header
      _
    $region3: #{tpu_custom_call.1} parent=1 // loop_header
      %s18 = sphi 0, %s22
      %p19 = scmp.ge.s32.totalorder %s18, 4
      %s28 = sphi 0, %s30
      %s31 = sphi 0, %s28
      %s32 = sphi 0, %s31
      %s48 = sphi 0, %s32
      %s52 = sphi 0, %s52
      %s54 = sphi 0, %s52
      %s55 = sphi 0, %s54
      %s69 = sphi 0, %s55
      %s73 = sphi 0, %s73
      %s75 = sphi 0, %s73
      %s76 = sphi 0, %s75
      %s90 = sphi 0, %s76
      %s94 = sphi 0, %s94
      %s96 = sphi 0, %s94
      %s97 = sphi 0, %s96
      %s111 = sphi 0, %s97
      %s115 = sphi 0, %s115
      %s117 = sphi 0, %s115
      %s118 = sphi 0, %s117
      %s132 = sphi 0, %s118
      %s136 = sphi 0, %s136
      %s138 = sphi 0, %s136
      %s139 = sphi 0, %s138
      %s153 = sphi 0, %s139
      %s157 = sphi 0, %s157
      %s159 = sphi 0, %s157
      %s160 = sphi 0, %s159
      %s174 = sphi 0, %s160
      %s180 = sphi 0, %s182
      %s183 = sphi 0, %s180
      %s184 = sphi 0, %s183
      %s200 = sphi 0, %s184
    $region4: #{tpu_custom_call.1} parent=1 // loop_header_branch
      %21 = sbr.rel (%p19) target = $region8
    $region5: #{tpu_custom_call.1} parent=1 // loop_body
      %s23 = ssub.s32 %s18, 1
      %s24 = ssub.s32 %s18, 2
      %s25 = sadd.s32 %s18, 1
      %s26 = ssub.s32 %s18, %s25
      %p27 = scmp.eq.s32.totalorder %s26, 0
      %s29 = sadd.s32 %s28, 1
      %s30 = scalar_select %p27, %s28, %s29
      %p33 = pneg %p27
      %p34 = scmp.eq.s32.totalorder %s18, 1
      %p35 = por %p33, %p34
      %p36 = scmp.ne.s32.totalorder %s28, %s31
      %p37 = scmp.eq.s32.totalorder %s18, 0
      %p38 = por %p36, %p37
      %p39 = scmp.ne.s32.totalorder %s28, %s31
      %p40 = scmp.eq.s32.totalorder %s23, 1
      %p41 = por %p39, %p40
      %p42 = scmp.ne.s32.totalorder %s31, %s32
      %p43 = scmp.eq.s32.totalorder %s23, 0
      %p44 = por %p42, %p43
      %p45 = scmp.ne.s32.totalorder %s31, %s32
      %p46 = scmp.eq.s32.totalorder %s24, 1
      %p47 = por %p45, %p46
      %p49 = scmp.ne.s32.totalorder %s32, %s48
      %p50 = scmp.eq.s32.totalorder %s24, 0
      %p51 = por %p49, %p50
      %s53 = sadd.s32 %s52, 1
      %p56 = scmp.eq.s32.totalorder %s18, 1
      %p57 = scmp.ne.s32.totalorder %s52, %s54
      %p58 = scmp.eq.s32.totalorder %s18, 0
      %p59 = por %p57, %p58
      %p60 = scmp.ne.s32.totalorder %s52, %s54
      %p61 = scmp.eq.s32.totalorder %s23, 1
      %p62 = por %p60, %p61
      %p63 = scmp.ne.s32.totalorder %s54, %s55
      %p64 = scmp.eq.s32.totalorder %s23, 0
      %p65 = por %p63, %p64
      %p66 = scmp.ne.s32.totalorder %s54, %s55
      %p67 = scmp.eq.s32.totalorder %s24, 1
      %p68 = por %p66, %p67
      %p70 = scmp.ne.s32.totalorder %s55, %s69
      %p71 = scmp.eq.s32.totalorder %s24, 0
      %p72 = por %p70, %p71
      %s74 = sadd.s32 %s73, 1
      %p77 = scmp.eq.s32.totalorder %s18, 1
      %p78 = scmp.ne.s32.totalorder %s73, %s75
      %p79 = scmp.eq.s32.totalorder %s18, 0
      %p80 = por %p78, %p79
      %p81 = scmp.ne.s32.totalorder %s73, %s75
      %p82 = scmp.eq.s32.totalorder %s23, 1
      %p83 = por %p81, %p82
      %p84 = scmp.ne.s32.totalorder %s75, %s76
      %p85 = scmp.eq.s32.totalorder %s23, 0
      %p86 = por %p84, %p85
      %p87 = scmp.ne.s32.totalorder %s75, %s76
      %p88 = scmp.eq.s32.totalorder %s24, 1
      %p89 = por %p87, %p88
      %p91 = scmp.ne.s32.totalorder %s76, %s90
      %p92 = scmp.eq.s32.totalorder %s24, 0
      %p93 = por %p91, %p92
      %s95 = sadd.s32 %s94, 1
      %p98 = scmp.eq.s32.totalorder %s18, 1
      %p99 = scmp.ne.s32.totalorder %s94, %s96
      %p100 = scmp.eq.s32.totalorder %s18, 0
      %p101 = por %p99, %p100
      %p102 = scmp.ne.s32.totalorder %s94, %s96
      %p103 = scmp.eq.s32.totalorder %s23, 1
      %p104 = por %p102, %p103
      %p105 = scmp.ne.s32.totalorder %s96, %s97
      %p106 = scmp.eq.s32.totalorder %s23, 0
      %p107 = por %p105, %p106
      %p108 = scmp.ne.s32.totalorder %s96, %s97
      %p109 = scmp.eq.s32.totalorder %s24, 1
      %p110 = por %p108, %p109
      %p112 = scmp.ne.s32.totalorder %s97, %s111
      %p113 = scmp.eq.s32.totalorder %s24, 0
      %p114 = por %p112, %p113
      %s116 = sadd.s32 %s115, 1
      %p119 = scmp.eq.s32.totalorder %s18, 1
      %p120 = scmp.ne.s32.totalorder %s115, %s117
      %p121 = scmp.eq.s32.totalorder %s18, 0
      %p122 = por %p120, %p121
      %p123 = scmp.ne.s32.totalorder %s115, %s117
      %p124 = scmp.eq.s32.totalorder %s23, 1
      %p125 = por %p123, %p124
      %p126 = scmp.ne.s32.totalorder %s117, %s118
      %p127 = scmp.eq.s32.totalorder %s23, 0
      %p128 = por %p126, %p127
      %p129 = scmp.ne.s32.totalorder %s117, %s118
      %p130 = scmp.eq.s32.totalorder %s24, 1
      %p131 = por %p129, %p130
      %p133 = scmp.ne.s32.totalorder %s118, %s132
      %p134 = scmp.eq.s32.totalorder %s24, 0
      %p135 = por %p133, %p134
      %s137 = sadd.s32 %s136, 1
      %p140 = scmp.eq.s32.totalorder %s18, 1
      %p141 = scmp.ne.s32.totalorder %s136, %s138
      %p142 = scmp.eq.s32.totalorder %s18, 0
      %p143 = por %p141, %p142
      %p144 = scmp.ne.s32.totalorder %s136, %s138
      %p145 = scmp.eq.s32.totalorder %s23, 1
      %p146 = por %p144, %p145
      %p147 = scmp.ne.s32.totalorder %s138, %s139
      %p148 = scmp.eq.s32.totalorder %s23, 0
      %p149 = por %p147, %p148
      %p150 = scmp.ne.s32.totalorder %s138, %s139
      %p151 = scmp.eq.s32.totalorder %s24, 1
      %p152 = por %p150, %p151
      %p154 = scmp.ne.s32.totalorder %s139, %s153
      %p155 = scmp.eq.s32.totalorder %s24, 0
      %p156 = por %p154, %p155
      %s158 = sadd.s32 %s157, 1
      %p161 = scmp.eq.s32.totalorder %s18, 1
      %p162 = scmp.ne.s32.totalorder %s157, %s159
      %p163 = scmp.eq.s32.totalorder %s18, 0
      %p164 = por %p162, %p163
      %p165 = scmp.ne.s32.totalorder %s157, %s159
      %p166 = scmp.eq.s32.totalorder %s23, 1
      %p167 = por %p165, %p166
      %p168 = scmp.ne.s32.totalorder %s159, %s160
      %p169 = scmp.eq.s32.totalorder %s23, 0
      %p170 = por %p168, %p169
      %p171 = scmp.ne.s32.totalorder %s159, %s160
      %p172 = scmp.eq.s32.totalorder %s24, 1
      %p173 = por %p171, %p172
      %p175 = scmp.ne.s32.totalorder %s160, %s174
      %p176 = scmp.eq.s32.totalorder %s24, 0
      %p177 = por %p175, %p176
      %s178 = ssub.s32 %s18, %s25
      %p179 = scmp.eq.s32.totalorder %s178, 0
      %s181 = sadd.s32 %s180, 1
      %s182 = scalar_select %p179, %s180, %s181
      %p185 = pneg %p179
      %p186 = scmp.eq.s32.totalorder %s18, 1
      %p187 = por %p185, %p186
      %p188 = scmp.ne.s32.totalorder %s180, %s183
      %p189 = scmp.eq.s32.totalorder %s18, 0
      %p190 = por %p188, %p189
      %p191 = scmp.ne.s32.totalorder %s180, %s183
      %p192 = scmp.eq.s32.totalorder %s23, 1
      %p193 = por %p191, %p192
      %p194 = scmp.ne.s32.totalorder %s183, %s184
      %p195 = scmp.eq.s32.totalorder %s23, 0
      %p196 = por %p194, %p195
      %p197 = scmp.ne.s32.totalorder %s183, %s184
      %p198 = scmp.eq.s32.totalorder %s24, 1
      %p199 = por %p197, %p198
      %p201 = scmp.ne.s32.totalorder %s184, %s200
      %p202 = scmp.eq.s32.totalorder %s24, 0
      %p203 = por %p201, %p202
      %p204 = scmp.le.s32.totalorder 1, %s18
      %p205 = scmp.lt.s32.totalorder %s18, 3
      %p206 = pnand %p204, %p205
      %p207 = pneg %p206
      // Predicated region
      $region9: #{tpu_custom_call.1} parent=5 // pred_check
        _
      $region10: #{tpu_custom_call.1} parent=5 // pred_check_branch
        %209 = sbr.rel (%p206) target = $region12
      $region11: #{tpu_custom_call.1} parent=5 // pred_region
        %s210 = ssub.s32 %s18, 1
        // Predicated region
        $region13: #{tpu_custom_call.1} parent=11 // pred_check
          %p211 = pneg %p65
        $region14: #{tpu_custom_call.1} parent=11 // pred_check_branch
          %213 = sbr.rel (%p211) target = $region16
        $region15: #{tpu_custom_call.1} parent=11 // pred_region
          _
        $region16: #{tpu_custom_call.1} parent=11 // pred_fallthru
          _
        // Predicated region
        $region17: #{tpu_custom_call.1} parent=11 // pred_check
          %p214 = pneg %p86
        $region18: #{tpu_custom_call.1} parent=11 // pred_check_branch
          %216 = sbr.rel (%p214) target = $region20
        $region19: #{tpu_custom_call.1} parent=11 // pred_region
          _
        $region20: #{tpu_custom_call.1} parent=11 // pred_fallthru
          _
        // Predicated region
        $region21: #{tpu_custom_call.1} parent=11 // pred_check
          %p217 = pneg %p107
        $region22: #{tpu_custom_call.1} parent=11 // pred_check_branch
          %219 = sbr.rel (%p217) target = $region24
        $region23: #{tpu_custom_call.1} parent=11 // pred_region
          _
        $region24: #{tpu_custom_call.1} parent=11 // pred_fallthru
          _
        // Predicated region
        $region25: #{tpu_custom_call.1} parent=11 // pred_check
          %p220 = pneg %p128
        $region26: #{tpu_custom_call.1} parent=11 // pred_check_branch
          %222 = sbr.rel (%p220) target = $region28
        $region27: #{tpu_custom_call.1} parent=11 // pred_region
          _
        $region28: #{tpu_custom_call.1} parent=11 // pred_fallthru
          _
        // Predicated region
        $region29: #{tpu_custom_call.1} parent=11 // pred_check
          %p223 = pneg %p149
        $region30: #{tpu_custom_call.1} parent=11 // pred_check_branch
          %225 = sbr.rel (%p223) target = $region32
        $region31: #{tpu_custom_call.1} parent=11 // pred_region
          _
        $region32: #{tpu_custom_call.1} parent=11 // pred_fallthru
          _
        // Predicated region
        $region33: #{tpu_custom_call.1} parent=11 // pred_check
          %p226 = pneg %p170
        $region34: #{tpu_custom_call.1} parent=11 // pred_check_branch
          %228 = sbr.rel (%p226) target = $region36
        $region35: #{tpu_custom_call.1} parent=11 // pred_region
          _
        $region36: #{tpu_custom_call.1} parent=11 // pred_fallthru
          _
      $region12: #{tpu_custom_call.1} parent=5 // pred_fallthru
        _
      %p229 = scmp.lt.s32.totalorder %s18, 2
      // Predicated region
      $region37: #{tpu_custom_call.1} parent=5 // pred_check
        %p230 = pneg %p229
      $region38: #{tpu_custom_call.1} parent=5 // pred_check_branch
        %232 = sbr.rel (%p230) target = $region40
      $region39: #{tpu_custom_call.1} parent=5 // pred_region
        // Predicated region
        $region41: #{tpu_custom_call.1} parent=39 // pred_check
          %p233 = pneg %p38
        $region42: #{tpu_custom_call.1} parent=39 // pred_check_branch
          %235 = sbr.rel (%p233) target = $region44
        $region43: #{tpu_custom_call.1} parent=39 // pred_region
          %s236 = smul.u32 32, %s18
          %p237 = scmp.lt.s32.totalorder %s236, 63
          %s238 = scalar_select %p237, %s236, 63
          %s239 = smul.addr %s238, 8
          %s240 = scalar_lea.vmem %s0, %s239
          %s241 = smul.u32 32, %s18
        $region44: #{tpu_custom_call.1} parent=39 // pred_fallthru
          _
      $region40: #{tpu_custom_call.1} parent=5 // pred_fallthru
        _
      %p242 = scmp.le.s32.totalorder 1, %s18
      %p243 = scmp.lt.s32.totalorder %s18, 3
      %p244 = pnand %p242, %p243
      %p245 = pneg %p244
      // Predicated region
      $region45: #{tpu_custom_call.1} parent=5 // pred_check
        _
      $region46: #{tpu_custom_call.1} parent=5 // pred_check_branch
        %247 = sbr.rel (%p244) target = $region48
      $region47: #{tpu_custom_call.1} parent=5 // pred_region
        %s248 = ssub.s32 %s18, 1
        %s249 = smul.u32 32, %s23
        %p250 = scmp.lt.s32.totalorder %s249, 63
        %s251 = scalar_select %p250, %s249, 63
        %s252 = smul.addr %s251, 8
        %s253 = scalar_lea.vmem %s0, %s252
        %p254 = pneg %p44
        %p255 = pneg %p41
        %p256 = pneg %p65
        %p257 = pneg %p62
        %p258 = pneg %p86
        %p259 = pneg %p83
        %p260 = pneg %p107
        %p261 = pneg %p104
        %p262 = pneg %p128
        %p263 = pneg %p125
        %p264 = pneg %p149
        %p265 = pneg %p146
        %p266 = pneg %p170
        %p267 = pneg %p167
        %p268 = pneg %p196
        %p269 = pneg %p193
        %s270 = sand.u32 %s183, 1
        %s271 = scalar_lea.sflag [#allocation4], %s270
        %s272 = sand.u32 %s183, 1
        %s273 = smul.addr %s272, 2
        %s274 = scalar_lea.vmem [#allocation3], %s273
        %s275 = smul.u32 32, %s23
        %p276 = scmp.lt.s32.totalorder %s275, 63
        %s277 = scalar_select %p276, %s275, 63
        %s278 = smul.addr %s277, 8
        %s279 = scalar_lea.vmem %s0, %s278
        %s280 = smul.u32 32, %s23
        %s281 = smul.u32 2, %s23
        %v282 = vld [vmem:[%s279] sm:$0xff]
        %v283 = vld [vmem:[%s279 + $0x8] sm:$0xff]
        %v284 = vld [vmem:[%s279 + $0x10] sm:$0xff]
        %v285 = vld [vmem:[%s279 + $0x18] sm:$0xff]
        %v286 = vld [vmem:[%s279 + $0x20] sm:$0xff]
        %v287 = vld [vmem:[%s279 + $0x28] sm:$0xff]
        %v288 = vld [vmem:[%s279 + $0x30] sm:$0xff]
        %v289 = vld [vmem:[%s279 + $0x38] sm:$0xff]
        %v290 = vld [vmem:[%s279 + $0x40] sm:$0xff]
        %v291 = vld [vmem:[%s279 + $0x48] sm:$0xff]
        %v292 = vld [vmem:[%s279 + $0x50] sm:$0xff]
        %v293 = vld [vmem:[%s279 + $0x58] sm:$0xff]
        %v294 = vld [vmem:[%s279 + $0x60] sm:$0xff]
        %v295 = vld [vmem:[%s279 + $0x68] sm:$0xff]
        %v296 = vld [vmem:[%s279 + $0x70] sm:$0xff]
        %v297 = vld [vmem:[%s279 + $0x78] sm:$0xff]
        %v298 = vld [vmem:[%s279 + $0x80] sm:$0xff]
        %v299 = vld [vmem:[%s279 + $0x88] sm:$0xff]
        %v300 = vld [vmem:[%s279 + $0x90] sm:$0xff]
        %v301 = vld [vmem:[%s279 + $0x98] sm:$0xff]
        %v302 = vld [vmem:[%s279 + $0xa0] sm:$0xff]
        %v303 = vld [vmem:[%s279 + $0xa8] sm:$0xff]
        %v304 = vld [vmem:[%s279 + $0xb0] sm:$0xff]
        %v305 = vld [vmem:[%s279 + $0xb8] sm:$0xff]
        %v306 = vld [vmem:[%s279 + $0xc0] sm:$0xff]
        %v307 = vld [vmem:[%s279 + $0xc8] sm:$0xff]
        %v308 = vld [vmem:[%s279 + $0xd0] sm:$0xff]
        %v309 = vld [vmem:[%s279 + $0xd8] sm:$0xff]
        %v310 = vld [vmem:[%s279 + $0xe0] sm:$0xff]
        %v311 = vld [vmem:[%s279 + $0xe8] sm:$0xff]
        %v312 = vld [vmem:[%s279 + $0xf0] sm:$0xff]
        %v313 = vld [vmem:[%s279 + $0xf8] sm:$0xff]
        %v314 = vld [vmem:[%s1] sm:$0xff]
        %v315 = vld [vmem:[%s1 + $0x8] sm:$0xff]
        %v316 = vld [vmem:[%s1 + $0x10] sm:$0xff]
        %v317 = vld [vmem:[%s1 + $0x18] sm:$0xff]
        %v318 = vld [vmem:[%s3] sm:$0xff]
        %v319 = vld [vmem:[%s3 + $0x8] sm:$0xff]
        %v320 = vld [vmem:[%s3 + $0x10] sm:$0xff]
        %v321 = vld [vmem:[%s3 + $0x18] sm:$0xff]
        %v322 = vld [vmem:[%s3 + $0x20] sm:$0xff]
        %v323 = vld [vmem:[%s3 + $0x28] sm:$0xff]
        %v324 = vld [vmem:[%s3 + $0x30] sm:$0xff]
        %v325 = vld [vmem:[%s3 + $0x38] sm:$0xff]
        %v326 = vld [vmem:[%s5] sm:$0x1]
        %v327 = vld [vmem:[%s2] sm:$0xff]
        %v328 = vld [vmem:[%s2 + $0x8] sm:$0xff]
        %v329 = vld [vmem:[%s2 + $0x10] sm:$0xff]
        %v330 = vld [vmem:[%s2 + $0x18] sm:$0xff]
        %332 = vset.pattern.permute.xlu0 0
        %333 = vperm.xlu0 %332, %v327
        %v334 = vpop.permute.xlu0 %333
        %337 = vset.pattern.permute.xlu0 0
        %338 = vperm.xlu0 %337, %v328
        %v339 = vpop.permute.xlu0 %338
        %342 = vset.pattern.permute.xlu0 0
        %343 = vperm.xlu0 %342, %v329
        %v344 = vpop.permute.xlu0 %343
        %347 = vset.pattern.permute.xlu0 0
        %348 = vperm.xlu0 %347, %v330
        %v349 = vpop.permute.xlu0 %348
        %vm351 = vcmask 261120
        %v353 = vsel %vm351, %v314, 0
        %v356 = vsel %vm351, %v315, 0
        %v359 = vsel %vm351, %v316, 0
        %v362 = vsel %vm351, %v317, 0
        %v365 = vsel %vm351, %v282, 0
        %v368 = vsel %vm351, %v283, 0
        %v371 = vsel %vm351, %v284, 0
        %v374 = vsel %vm351, %v285, 0
        %v377 = vsel %vm351, %v286, 0
        %v380 = vsel %vm351, %v287, 0
        %v383 = vsel %vm351, %v288, 0
        %v386 = vsel %vm351, %v289, 0
        %v389 = vsel %vm351, %v290, 0
        %v392 = vsel %vm351, %v291, 0
        %v395 = vsel %vm351, %v292, 0
        %v398 = vsel %vm351, %v293, 0
        %v401 = vsel %vm351, %v294, 0
        %v404 = vsel %vm351, %v295, 0
        %v407 = vsel %vm351, %v296, 0
        %v410 = vsel %vm351, %v297, 0
        %v413 = vsel %vm351, %v298, 0
        %v416 = vsel %vm351, %v299, 0
        %v419 = vsel %vm351, %v300, 0
        %v422 = vsel %vm351, %v301, 0
        %v425 = vsel %vm351, %v302, 0
        %v428 = vsel %vm351, %v303, 0
        %v431 = vsel %vm351, %v304, 0
        %v434 = vsel %vm351, %v305, 0
        %v437 = vsel %vm351, %v306, 0
        %v440 = vsel %vm351, %v307, 0
        %v443 = vsel %vm351, %v308, 0
        %v446 = vsel %vm351, %v309, 0
        %v449 = vsel %vm351, %v310, 0
        %v452 = vsel %vm351, %v311, 0
        %v455 = vsel %vm351, %v312, 0
        %v458 = vsel %vm351, %v313, 0
        %460 = vmatprep.subr.mxu0 0.0
        %461 = vmatpush1.xpose.msra.mxu0 %v365
        %462 = vmatprep.subr.mxu0 0.0
        %463 = vmatpush1.xpose.msra.mxu0 %v368
        %464 = vmatprep.subr.mxu0 0.0
        %465 = vmatpush1.xpose.msra.mxu0 %v371
        %466 = vmatprep.subr.mxu0 0.0
        %467 = vmatpush1.xpose.msra.mxu0 %v374
        %468 = vmatprep.subr.mxu0 0.0
        %469 = vmatpush1.xpose.msra.mxu0 %v377
        %470 = vmatprep.subr.mxu0 0.0
        %471 = vmatpush1.xpose.msra.mxu0 %v380
        %472 = vmatprep.subr.mxu0 0.0
        %473 = vmatpush1.xpose.msra.mxu0 %v383
        %474 = vmatprep.subr.mxu0 0.0
        %475 = vmatpush1.xpose.msra.mxu0 %v386
        %476 = vmatprep.subr.mxu0 0.0
        %477 = vmatpush1.xpose.msra.mxu0 %v389
        %478 = vmatprep.subr.mxu0 0.0
        %479 = vmatpush1.xpose.msra.mxu0 %v392
        %480 = vmatprep.subr.mxu0 0.0
        %481 = vmatpush1.xpose.msra.mxu0 %v395
        %482 = vmatprep.subr.mxu0 0.0
        %483 = vmatpush1.xpose.msra.mxu0 %v398
        %484 = vmatprep.subr.mxu0 0.0
        %485 = vmatpush1.xpose.msra.mxu0 %v401
        %486 = vmatprep.subr.mxu0 0.0
        %487 = vmatpush1.xpose.msra.mxu0 %v404
        %488 = vmatprep.subr.mxu0 0.0
        %489 = vmatpush1.xpose.msra.mxu0 %v407
        %490 = vmatprep.subr.mxu0 0.0
        %491 = vmatpush1.xpose.msra.mxu0 %v410
        %492 = vmatprep.subr.mxu0 0.0
        %493 = vmatpush1.xpose.msra.mxu0 %v413
        %494 = vmatprep.subr.mxu0 0.0
        %495 = vmatpush1.xpose.msra.mxu0 %v416
        %496 = vmatprep.subr.mxu0 0.0
        %497 = vmatpush1.xpose.msra.mxu0 %v419
        %498 = vmatprep.subr.mxu0 0.0
        %499 = vmatpush1.xpose.msra.mxu0 %v422
        %500 = vmatprep.subr.mxu0 0.0
        %501 = vmatpush1.xpose.msra.mxu0 %v425
        %502 = vmatprep.subr.mxu0 0.0
        %503 = vmatpush1.xpose.msra.mxu0 %v428
        %504 = vmatprep.subr.mxu0 0.0
        %505 = vmatpush1.xpose.msra.mxu0 %v431
        %506 = vmatprep.subr.mxu0 0.0
        %507 = vmatpush1.xpose.msra.mxu0 %v434
        %508 = vmatprep.subr.mxu0 0.0
        %509 = vmatpush1.xpose.msra.mxu0 %v437
        %510 = vmatprep.subr.mxu0 0.0
        %511 = vmatpush1.xpose.msra.mxu0 %v440
        %512 = vmatprep.subr.mxu0 0.0
        %513 = vmatpush1.xpose.msra.mxu0 %v443
        %514 = vmatprep.subr.mxu0 0.0
        %515 = vmatpush1.xpose.msra.mxu0 %v446
        %516 = vmatprep.subr.mxu0 0.0
        %517 = vmatpush1.xpose.msra.mxu0 %v449
        %518 = vmatprep.subr.mxu0 0.0
        %519 = vmatpush1.xpose.msra.mxu0 %v452
        %520 = vmatprep.subr.mxu0 0.0
        %521 = vmatpush1.xpose.msra.mxu0 %v455
        %522 = vmatprep.subr.mxu0 0.0
        %523 = vmatpush1.xpose.msra.mxu0 %v458
        %524 = vmatprep.mubr.f32.mxu0 0.0
        %525 = vmatmul.mubr.f32.gmra.mrb[0].mxu0 %v353
        %v526 = vpop.f32.mrb[0].mxu0
        %v527 = vadd.f32 %v334, %v526
        %v528 = vpop.f32.mrb[0].mxu0
        %v529 = vadd.f32 %v334, %v528
        %530 = vmatprep.mubr.f32.mxu0 0.0
        %531 = vmatmul.mubr.f32.gmra.mrb[0].mxu0 %v356
        %v532 = vpop.f32.mrb[0].mxu0
        %v533 = vadd.f32 %v339, %v532
        %v534 = vpop.f32.mrb[0].mxu0
        %v535 = vadd.f32 %v339, %v534
        %536 = vmatprep.mubr.f32.mxu0 0.0
        %537 = vmatmul.mubr.f32.gmra.mrb[0].mxu0 %v359
        %v538 = vpop.f32.mrb[0].mxu0
        %v539 = vadd.f32 %v344, %v538
        %v540 = vpop.f32.mrb[0].mxu0
        %v541 = vadd.f32 %v344, %v540
        %542 = vmatprep.mubr.f32.mxu0 0.0
        %543 = vmatmul.mubr.f32.gmra.mrb[0].mxu0 %v362
        %v544 = vpop.f32.mrb[0].mxu0
        %v545 = vadd.f32 %v349, %v544
        %v546 = vpop.f32.mrb[0].mxu0
        %v547 = vadd.f32 %v349, %v546
        %548 = vdwg.mxu0
        %v549 = vmax.f32 %v527, 0.0
        %v550 = vmax.f32 %v529, 0.0
        %v551 = vmax.f32 %v533, 0.0
        %v552 = vmax.f32 %v535, 0.0
        %v553 = vmax.f32 %v539, 0.0
        %v554 = vmax.f32 %v541, 0.0
        %v555 = vmax.f32 %v545, 0.0
        %v556 = vmax.f32 %v547, 0.0
        %v557 = vld [vmem:[%s4] sm:$0xff]
        %v558 = vld [vmem:[%s4 + $0x8] sm:$0xff]
        %v559 = vld [vmem:[%s4 + $0x10] sm:$0xff]
        %v560 = vld [vmem:[%s4 + $0x18] sm:$0xff]
        %v561 = vld [vmem:[%s4 + $0x20] sm:$0xff]
        %v562 = vld [vmem:[%s4 + $0x28] sm:$0xff]
        %v563 = vld [vmem:[%s4 + $0x30] sm:$0xff]
        %v564 = vld [vmem:[%s4 + $0x38] sm:$0xff]
        %566 = vset.pattern.permute.xlu0 0
        %567 = vperm.xlu0 %566, %v557
        %v568 = vpop.permute.xlu0 %567
        %571 = vset.pattern.permute.xlu0 0
        %572 = vperm.xlu0 %571, %v558
        %v573 = vpop.permute.xlu0 %572
        %576 = vset.pattern.permute.xlu0 0
        %577 = vperm.xlu0 %576, %v559
        %v578 = vpop.permute.xlu0 %577
        %581 = vset.pattern.permute.xlu0 0
        %582 = vperm.xlu0 %581, %v560
        %v583 = vpop.permute.xlu0 %582
        %586 = vset.pattern.permute.xlu0 0
        %587 = vperm.xlu0 %586, %v561
        %v588 = vpop.permute.xlu0 %587
        %591 = vset.pattern.permute.xlu0 0
        %592 = vperm.xlu0 %591, %v562
        %v593 = vpop.permute.xlu0 %592
        %596 = vset.pattern.permute.xlu0 0
        %597 = vperm.xlu0 %596, %v563
        %v598 = vpop.permute.xlu0 %597
        %601 = vset.pattern.permute.xlu0 0
        %602 = vperm.xlu0 %601, %v564
        %v603 = vpop.permute.xlu0 %602
        %v606 = vsel %vm351, %v318, 0
        %v609 = vsel %vm351, %v319, 0
        %v612 = vsel %vm351, %v320, 0
        %v615 = vsel %vm351, %v321, 0
        %v618 = vsel %vm351, %v322, 0
        %v621 = vsel %vm351, %v323, 0
        %v624 = vsel %vm351, %v324, 0
        %v627 = vsel %vm351, %v325, 0
        %629 = vmatprep.subr.mxu0 %v550
        %630 = vmatpush1.msra.mxu0 %v549
        %631 = vmatprep.subr.mxu0 %v552
        %632 = vmatpush1.msra.mxu0 %v551
        %633 = vmatprep.subr.mxu0 %v554
        %634 = vmatpush1.msra.mxu0 %v553
        %635 = vmatprep.subr.mxu0 %v556
        %636 = vmatpush1.msra.mxu0 %v555
        %637 = vmatprep.subr.mxu0 0.0
        %638 = vmatpush1.msra.mxu0 0.0
        %639 = vmatprep.subr.mxu0 0.0
        %640 = vmatpush1.msra.mxu0 0.0
        %641 = vmatprep.subr.mxu0 0.0
        %642 = vmatpush1.msra.mxu0 0.0
        %643 = vmatprep.subr.mxu0 0.0
        %644 = vmatpush1.msra.mxu0 0.0
        %645 = vmatprep.subr.mxu0 0.0
        %646 = vmatpush1.msra.mxu0 0.0
        %647 = vmatprep.subr.mxu0 0.0
        %648 = vmatpush1.msra.mxu0 0.0
        %649 = vmatprep.subr.mxu0 0.0
        %650 = vmatpush1.msra.mxu0 0.0
        %651 = vmatprep.subr.mxu0 0.0
        %652 = vmatpush1.msra.mxu0 0.0
        %653 = vmatprep.subr.mxu0 0.0
        %654 = vmatpush1.msra.mxu0 0.0
        %655 = vmatprep.subr.mxu0 0.0
        %656 = vmatpush1.msra.mxu0 0.0
        %657 = vmatprep.subr.mxu0 0.0
        %658 = vmatpush1.msra.mxu0 0.0
        %659 = vmatprep.subr.mxu0 0.0
        %660 = vmatpush1.msra.mxu0 0.0
        %661 = vmatprep.subr.mxu0 0.0
        %662 = vmatpush1.msra.mxu0 0.0
        %663 = vmatprep.subr.mxu0 0.0
        %664 = vmatpush1.msra.mxu0 0.0
        %665 = vmatprep.subr.mxu0 0.0
        %666 = vmatpush1.msra.mxu0 0.0
        %667 = vmatprep.subr.mxu0 0.0
        %668 = vmatpush1.msra.mxu0 0.0
        %669 = vmatprep.subr.mxu0 0.0
        %670 = vmatpush1.msra.mxu0 0.0
        %671 = vmatprep.subr.mxu0 0.0
        %672 = vmatpush1.msra.mxu0 0.0
        %673 = vmatprep.subr.mxu0 0.0
        %674 = vmatpush1.msra.mxu0 0.0
        %675 = vmatprep.subr.mxu0 0.0
        %676 = vmatpush1.msra.mxu0 0.0
        %677 = vmatprep.subr.mxu0 0.0
        %678 = vmatpush1.msra.mxu0 0.0
        %679 = vmatprep.subr.mxu0 0.0
        %680 = vmatpush1.msra.mxu0 0.0
        %681 = vmatprep.subr.mxu0 0.0
        %682 = vmatpush1.msra.mxu0 0.0
        %683 = vmatprep.subr.mxu0 0.0
        %684 = vmatpush1.msra.mxu0 0.0
        %685 = vmatprep.subr.mxu0 0.0
        %686 = vmatpush1.msra.mxu0 0.0
        %687 = vmatprep.subr.mxu0 0.0
        %688 = vmatpush1.msra.mxu0 0.0
        %689 = vmatprep.subr.mxu0 0.0
        %690 = vmatpush1.msra.mxu0 0.0
        %691 = vmatprep.subr.mxu0 0.0
        %692 = vmatpush1.msra.mxu0 0.0
        %693 = vmatprep.mubr.f32.mxu0 0.0
        %694 = vmatmul.mubr.f32.gmra.mrb[0].mxu0 %v606
        %v695 = vpop.f32.mrb[0].mxu0
        %v696 = vadd.f32 %v568, %v695
        %v697 = vpop.f32.mrb[0].mxu0
        %v698 = vadd.f32 %v568, %v697
        %699 = vmatprep.mubr.f32.mxu0 0.0
        %700 = vmatmul.mubr.f32.gmra.mrb[0].mxu0 %v609
        %v701 = vpop.f32.mrb[0].mxu0
        %v702 = vadd.f32 %v573, %v701
        %v703 = vpop.f32.mrb[0].mxu0
        %v704 = vadd.f32 %v573, %v703
        %705 = vmatprep.mubr.f32.mxu0 0.0
        %706 = vmatmul.mubr.f32.gmra.mrb[0].mxu0 %v612
        %v707 = vpop.f32.mrb[0].mxu0
        %v708 = vadd.f32 %v578, %v707
        %v709 = vpop.f32.mrb[0].mxu0
        %v710 = vadd.f32 %v578, %v709
        %711 = vmatprep.mubr.f32.mxu0 0.0
        %712 = vmatmul.mubr.f32.gmra.mrb[0].mxu0 %v615
        %v713 = vpop.f32.mrb[0].mxu0
        %v714 = vadd.f32 %v583, %v713
        %v715 = vpop.f32.mrb[0].mxu0
        %v716 = vadd.f32 %v583, %v715
        %717 = vmatprep.mubr.f32.mxu0 0.0
        %718 = vmatmul.mubr.f32.gmra.mrb[0].mxu0 %v618
        %v719 = vpop.f32.mrb[0].mxu0
        %v720 = vadd.f32 %v588, %v719
        %v721 = vpop.f32.mrb[0].mxu0
        %v722 = vadd.f32 %v588, %v721
        %723 = vmatprep.mubr.f32.mxu0 0.0
        %724 = vmatmul.mubr.f32.gmra.mrb[0].mxu0 %v621
        %v725 = vpop.f32.mrb[0].mxu0
        %v726 = vadd.f32 %v593, %v725
        %v727 = vpop.f32.mrb[0].mxu0
        %v728 = vadd.f32 %v593, %v727
        %729 = vmatprep.mubr.f32.mxu0 0.0
        %730 = vmatmul.mubr.f32.gmra.mrb[0].mxu0 %v624
        %v731 = vpop.f32.mrb[0].mxu0
        %v732 = vadd.f32 %v598, %v731
        %v733 = vpop.f32.mrb[0].mxu0
        %v734 = vadd.f32 %v598, %v733
        %735 = vmatprep.mubr.f32.mxu0 0.0
        %736 = vmatmul.mubr.f32.gmra.mrb[0].mxu0 %v627
        %v737 = vpop.f32.mrb[0].mxu0
        %v738 = vadd.f32 %v603, %v737
        %v739 = vpop.f32.mrb[0].mxu0
        %v740 = vadd.f32 %v603, %v739
        %741 = vdwg.mxu0
        %v742 = vmax.f32 %v696, 0.0
        %v743 = vmax.f32 %v698, 0.0
        %v744 = vmax.f32 %v702, 0.0
        %v745 = vmax.f32 %v704, 0.0
        %v746 = vmax.f32 %v708, 0.0
        %v747 = vmax.f32 %v710, 0.0
        %v748 = vmax.f32 %v714, 0.0
        %v749 = vmax.f32 %v716, 0.0
        %v750 = vmax.f32 %v720, 0.0
        %v751 = vmax.f32 %v722, 0.0
        %v752 = vmax.f32 %v726, 0.0
        %v753 = vmax.f32 %v728, 0.0
        %v754 = vmax.f32 %v732, 0.0
        %v755 = vmax.f32 %v734, 0.0
        %v756 = vmax.f32 %v738, 0.0
        %v757 = vmax.f32 %v740, 0.0
        %v758 = vld [vmem:[#allocation2] sm:$0x1]
        %760 = vset.pattern.permute.xlu0 0
        %761 = vperm.xlu0 %760, %v758
        %v762 = vpop.permute.xlu0 %761
        %v764 = vlaneseq
        %v765 = vshrl.u32 %v764, 7
        %v766 = vsub.s32 0, %v765
        %v767 = vrot.slane %v762, %v766
        %vm768 = vcmask 523264
        %v770 = vsel %vm768, %v326, 0
        %772 = vmatprep.subr.mxu0 %v743
        %773 = vmatpush1.msra.mxu0 %v742
        %774 = vmatprep.subr.mxu0 %v745
        %775 = vmatpush1.msra.mxu0 %v744
        %776 = vmatprep.subr.mxu0 %v747
        %777 = vmatpush1.msra.mxu0 %v746
        %778 = vmatprep.subr.mxu0 %v749
        %779 = vmatpush1.msra.mxu0 %v748
        %780 = vmatprep.subr.mxu0 %v751
        %781 = vmatpush1.msra.mxu0 %v750
        %782 = vmatprep.subr.mxu0 %v753
        %783 = vmatpush1.msra.mxu0 %v752
        %784 = vmatprep.subr.mxu0 %v755
        %785 = vmatpush1.msra.mxu0 %v754
        %786 = vmatprep.subr.mxu0 %v757
        %787 = vmatpush1.msra.mxu0 %v756
        %788 = vmatprep.subr.mxu0 0.0
        %789 = vmatpush1.msra.mxu0 0.0
        %790 = vmatprep.subr.mxu0 0.0
        %791 = vmatpush1.msra.mxu0 0.0
        %792 = vmatprep.subr.mxu0 0.0
        %793 = vmatpush1.msra.mxu0 0.0
        %794 = vmatprep.subr.mxu0 0.0
        %795 = vmatpush1.msra.mxu0 0.0
        %796 = vmatprep.subr.mxu0 0.0
        %797 = vmatpush1.msra.mxu0 0.0
        %798 = vmatprep.subr.mxu0 0.0
        %799 = vmatpush1.msra.mxu0 0.0
        %800 = vmatprep.subr.mxu0 0.0
        %801 = vmatpush1.msra.mxu0 0.0
        %802 = vmatprep.subr.mxu0 0.0
        %803 = vmatpush1.msra.mxu0 0.0
        %804 = vmatprep.subr.mxu0 0.0
        %805 = vmatpush1.msra.mxu0 0.0
        %806 = vmatprep.subr.mxu0 0.0
        %807 = vmatpush1.msra.mxu0 0.0
        %808 = vmatprep.subr.mxu0 0.0
        %809 = vmatpush1.msra.mxu0 0.0
        %810 = vmatprep.subr.mxu0 0.0
        %811 = vmatpush1.msra.mxu0 0.0
        %812 = vmatprep.subr.mxu0 0.0
        %813 = vmatpush1.msra.mxu0 0.0
        %814 = vmatprep.subr.mxu0 0.0
        %815 = vmatpush1.msra.mxu0 0.0
        %816 = vmatprep.subr.mxu0 0.0
        %817 = vmatpush1.msra.mxu0 0.0
        %818 = vmatprep.subr.mxu0 0.0
        %819 = vmatpush1.msra.mxu0 0.0
        %820 = vmatprep.subr.mxu0 0.0
        %821 = vmatpush1.msra.mxu0 0.0
        %822 = vmatprep.subr.mxu0 0.0
        %823 = vmatpush1.msra.mxu0 0.0
        %824 = vmatprep.subr.mxu0 0.0
        %825 = vmatpush1.msra.mxu0 0.0
        %826 = vmatprep.subr.mxu0 0.0
        %827 = vmatpush1.msra.mxu0 0.0
        %828 = vmatprep.subr.mxu0 0.0
        %829 = vmatpush1.msra.mxu0 0.0
        %830 = vmatprep.subr.mxu0 0.0
        %831 = vmatpush1.msra.mxu0 0.0
        %832 = vmatprep.subr.mxu0 0.0
        %833 = vmatpush1.msra.mxu0 0.0
        %834 = vmatprep.subr.mxu0 0.0
        %835 = vmatpush1.msra.mxu0 0.0
        %836 = vmatprep.mubr.f32.mxu0 0.0
        %837 = vmatmul.mubr.f32.gmra.mrb[0].mxu0 %v770
        %v838 = vpop.f32.mrb[0].mxu0
        %v839 = vadd.f32 %v767, %v838
        %v840 = vpop.f32.mrb[0].mxu0
        %v841 = vadd.f32 %v767, %v840
        %842 = vdwg.mxu0
        %v845 = vcombine.low %v839, %v841
        %v847 = vunpack.c.l.s4 1966171168
        %v848 = vunpack.c.0.s8 %v847
        %v849 = vlaneseq
        %v850 = vshrl.u32 %v849, 7
        %v851 = vsub.s32 %v848, %v850
        %v852 = vrot.slane %v845, %v851
        %v854 = vunpack.c.l.s4 1966171168
        %v855 = vunpack.c.0.s8 %v854
        %v856 = vlaneseq
        %v857 = vshrl.u32 %v856, 7
        %v858 = vsub.s32 %v855, %v857
        %v859 = vrot.slane %v852, %v858
        %v861 = vlaneseq
        %vm862 = vcmp.ge.s32.totalorder %v861, 0
        %vm863 = vcmp.lt.s32.totalorder %v861, 256
        %vm864 = vmand %vm862, %vm863
        %865 = vst.msk [vmem:[%s274] sm:$0x3] %vm864, %v859
        %s866 = sand.u32 %s183, 1
        %s867 = scalar_lea.sflag [#allocation4], %s866
        %s868 = sand.u32 %s183, 1
        %s869 = smul.addr %s868, 2
        %s870 = scalar_lea.vmem [#allocation3], %s869
        // Predicated region
        $region49: #{tpu_custom_call.1} parent=47 // pred_check
          %p871 = pneg %p193
        $region50: #{tpu_custom_call.1} parent=47 // pred_check_branch
          %873 = sbr.rel (%p871) target = $region52
        $region51: #{tpu_custom_call.1} parent=47 // pred_region
          %s874 = smul.u32 2, %s23
          %s876 = ssub.s32 32, 32
          %877 = vsyncadd %s867, %s876
          %s878 = smul.addr %s874, 16
          %s879 = scalar_lea.hbm %s7, %s878
          %s881 = sshll.u32 %s870, 4
          %s882 = int_to_ptr.vmem [resolvable:$true] %s881
          %884 = dma.vmem_to_hbm [thread:$0]  %s882, 32, %s879, %s867
        $region52: #{tpu_custom_call.1} parent=47 // pred_fallthru
          _
      $region48: #{tpu_custom_call.1} parent=5 // pred_fallthru
        _
      %p885 = scmp.le.s32.totalorder 2, %s18
      // Predicated region
      $region53: #{tpu_custom_call.1} parent=5 // pred_check
        %p886 = pneg %p885
      $region54: #{tpu_custom_call.1} parent=5 // pred_check_branch
        %888 = sbr.rel (%p886) target = $region56
      $region55: #{tpu_custom_call.1} parent=5 // pred_region
        %s889 = ssub.s32 %s18, 2
        // Predicated region
        $region57: #{tpu_custom_call.1} parent=55 // pred_check
          %p890 = pneg %p199
        $region58: #{tpu_custom_call.1} parent=55 // pred_check_branch
          %892 = sbr.rel (%p890) target = $region60
        $region59: #{tpu_custom_call.1} parent=55 // pred_region
          %s893 = sand.u32 %s184, 1
          %s894 = scalar_lea.sflag [#allocation4], %s893
          %s895 = sand.u32 %s184, 1
          %s896 = smul.addr %s895, 2
          %s897 = scalar_lea.vmem [#allocation3], %s896
          %898 = dma.done %s894, 32
        $region60: #{tpu_custom_call.1} parent=55 // pred_fallthru
          _
      $region56: #{tpu_custom_call.1} parent=5 // pred_fallthru
        _
    $region6: #{tpu_custom_call.1} parent=1 // loop_footer
      %s22 = sadd.s32 1, %s18
    $region7: #{tpu_custom_call.1} parent=1 // loop_footer_branch
      %17 = sbr.rel target = $region3
    $region8: #{tpu_custom_call.1} parent=1 // loop_exit
      _
    %899 = vsyncpa [#allocation4], 1
    %s900 = scalar_lea.sflag [#allocation4], 1
    %901 = vsyncpa %s900, 1

</llo_original>
